<compile_context>
chip_gen: v6e
topology: v6e:2x2x1
jax: 0.10.0
libtpu: 0.0.40
codegen_flags: <defaults>
</compile_context>

<pallas_src>
import functools
import math

import jax
import jax.numpy as jnp
from jax.experimental import pallas as pl
from jax.experimental.pallas import tpu as pltpu


def _round_up(v: int, m: int) -> int:
    return ((v + m - 1) // m) * m


def _pert_forward_kernel(x_ref, pert_ref, w_ref, b_ref, o_ref, acc_ref, *,
                         eps, lb, ub, do_clamp, compute_dtype):
    """One (i, j, k) grid step of: clamp(x + clamp(pert,-eps,eps), lb, ub) @ W + b.

    x_ref:    [tm, tk]  f32 input tile
    pert_ref: [1,  tk]  f32 perturbation tile (broadcast over the batch rows)
    w_ref:    [tk, tn]  compute_dtype weight tile
    b_ref:    [1,  tn]  f32 bias tile
    o_ref:    [tm, tn]  f32 logits tile (written only on the last k step)
    acc_ref:  [tm, tn]  f32 accumulator scratch (persists across the k axis)
    """
    k = pl.program_id(2)

    @pl.when(k == 0)
    def _():
        acc_ref[...] = jnp.zeros_like(acc_ref)

    # Project perturbation (inf-norm -> elementwise clamp), apply it (broadcast
    # [1, tk] over [tm, tk]) and optionally clamp to the input range.  Elementwise
    # path stays in f32; only the MXU operands are cast down to compute_dtype.
    x_adv = x_ref[...] + jnp.clip(pert_ref[...], -eps, eps)
    if do_clamp:
        x_adv = jnp.clip(x_adv, lb, ub)

    acc_ref[...] += jnp.dot(x_adv.astype(compute_dtype), w_ref[...],
                            preferred_element_type=jnp.float32)

    # Bias added once, on the final reduction step (not per-k).
    @pl.when(k == pl.num_programs(2) - 1)
    def _():
        o_ref[...] = acc_ref[...] + b_ref[...]


def pert_module_forward(x, pert, w, b, *, eps, input_range=(0.0, 1.0),
                        input_clamp=True, compute_dtype=jnp.bfloat16,
                        tm=None, tn=None, tk=None):
    """JAX wrapper mirroring PertModule.forward with a linear stand-in model.

    x:    [B, C, H, W]  (NCHW, like the PyTorch module)
    pert: [1, C, H, W]  trainable perturbation (shared across the batch)
    w:    [D, NC], b: [NC]  where D = C*H*W
    returns logits [B, NC] (float32)
    """
    B = x.shape[0]
    D = math.prod(x.shape[1:])
    NC = w.shape[1]

    # ---- tile sizes: lane-dense last dims, MXU-friendly, small enough for every
    #      generation's scoped VMEM (v7x has only 64 MiB physical). ----
    if tm is None:
        tm = min(_round_up(B, 8), 256)
    if tn is None:
        tn = min(_round_up(NC, 128), 512)
    if tk is None:
        tk = min(_round_up(D, 128), 512)

    Bp = _round_up(B, tm)
    NCp = _round_up(NC, tn)
    Dp = _round_up(D, tk)

    # ---- zero-pad operands.  Padding is exact: padded rows/cols of W are zero, so
    #      padded D columns contribute nothing and padded NC columns / batch rows are
    #      sliced off afterwards. ----
    x2 = jnp.zeros((Bp, Dp), jnp.float32).at[:B, :D].set(
        x.reshape(B, D).astype(jnp.float32))
    pert2 = jnp.zeros((1, Dp), jnp.float32).at[:, :D].set(
        pert.reshape(1, D).astype(jnp.float32))
    w2 = jnp.zeros((Dp, NCp), compute_dtype).at[:D, :NC].set(
        w.astype(compute_dtype))
    b2 = jnp.zeros((1, NCp), jnp.float32).at[:, :NC].set(
        b.reshape(1, NC).astype(jnp.float32))

    lb, ub = float(input_range[0]), float(input_range[1])
    do_clamp = bool(input_clamp) and math.isfinite(lb) and math.isfinite(ub)

    kernel = functools.partial(
        _pert_forward_kernel, eps=float(eps), lb=lb, ub=ub,
        do_clamp=do_clamp, compute_dtype=compute_dtype)

    grid = (Bp // tm, NCp // tn, Dp // tk)

    # Double-buffered inputs/output + accumulator, with headroom; stay above the
    # v5e 16 MiB scoped default and well below v7x's 64 MiB physical VMEM.
    w_itemsize = jnp.dtype(compute_dtype).itemsize
    vmem_need = (2 * (tm * tk * 4 + tk * 4 + tk * tn * w_itemsize
                      + tn * 4 + tm * tn * 4) + tm * tn * 4)
    vmem_limit = int(min(max(4 * vmem_need, 16 * 1024 * 1024), 48 * 1024 * 1024))

    out = pl.pallas_call(
        kernel,
        out_shape=jax.ShapeDtypeStruct((Bp, NCp), jnp.float32),
        grid_spec=pltpu.PrefetchScalarGridSpec(
            num_scalar_prefetch=0,
            grid=grid,
            in_specs=[
                pl.BlockSpec((tm, tk), lambda i, j, k: (i, k)),   # x
                pl.BlockSpec((1, tk), lambda i, j, k: (0, k)),    # pert
                pl.BlockSpec((tk, tn), lambda i, j, k: (k, j)),   # W
                pl.BlockSpec((1, tn), lambda i, j, k: (0, j)),    # b
            ],
            out_specs=pl.BlockSpec((tm, tn), lambda i, j, k: (i, j)),
            scratch_shapes=[pltpu.VMEM((tm, tn), jnp.float32)],
        ),
        compiler_params=pltpu.CompilerParams(
            dimension_semantics=("parallel", "parallel", "arbitrary"),
            vmem_limit_bytes=vmem_limit,
        ),
    )(x2, pert2, w2, b2)

    return out[:B, :NC]


def _reference(x, pert, w, b, *, eps, input_range=(0.0, 1.0), input_clamp=True,
               compute_dtype=jnp.bfloat16):
    """Pure-JAX reference matching the kernel's forward semantics (incl. bf16 matmul)."""
    B = x.shape[0]
    D = math.prod(x.shape[1:])
    x_adv = x.reshape(B, D) + jnp.clip(pert.reshape(1, D), -eps, eps)
    if input_clamp:
        x_adv = jnp.clip(x_adv, input_range[0], input_range[1])
    return jnp.dot(x_adv.astype(compute_dtype), w.astype(compute_dtype),
                   preferred_element_type=jnp.float32) + b[None, :]


if __name__ == "__main__":
    # Small shapes consistent with the module: data_shape = (C, H, W).
    B, C, H, W = 2, 4, 16, 16
    D = C * H * W          # 1024
    NC = 8                 # stand-in classifier output size
    EPS = 0.1
    INPUT_RANGE = (0.0, 1.0)

    key = jax.random.PRNGKey(0)
    kx, kp, kw, kb = jax.random.split(key, 4)

    # Input batch in [0, 1] (image-like).
    x = jax.random.uniform(kx, (B, C, H, W), dtype=jnp.float32)

    # random_init(): uniform in [-eps, eps] then project (clamp) -> already in-ball.
    pert = jax.random.uniform(
        kp, (1, C, H, W), dtype=jnp.float32, minval=-EPS, maxval=EPS)

    # Deterministic stand-in "pretrained model" parameters (frozen, eval mode).
    w_model = jax.random.normal(kw, (D, NC), dtype=jnp.float32) * 0.02
    b_model = jax.random.normal(kb, (NC,), dtype=jnp.float32) * 0.01

    out = pert_module_forward(
        x, pert, w_model, b_model, eps=EPS,
        input_range=INPUT_RANGE, input_clamp=True)
    out = jax.block_until_ready(out)

    ref = _reference(x, pert, w_model, b_model, eps=EPS,
                     input_range=INPUT_RANGE, input_clamp=True)
    assert out.shape == (B, NC)
    assert jnp.allclose(out, ref, atol=1e-3, rtol=1e-3), "mismatch vs reference"

    print("KERNEL_OK")
</pallas_src>

<mosaic_0001>
module attributes {stable_mosaic.version = 11 : i64} {
  func.func @_pert_forward_kernel(%arg0: i32, %arg1: i32, %arg2: i32, %arg3: memref<8x512xf32, #tpu.memory_space<vmem>>, %arg4: memref<1x512xf32, #tpu.memory_space<vmem>>, %arg5: memref<512x128xbf16, #tpu.memory_space<vmem>>, %arg6: memref<1x128xf32, #tpu.memory_space<vmem>>, %arg7: memref<8x128xf32, #tpu.memory_space<vmem>>, %arg8: memref<8x128xf32, #tpu.memory_space<vmem>>) attributes {dimension_semantics = [#tpu.dimension_semantics<parallel>, #tpu.dimension_semantics<parallel>, #tpu.dimension_semantics<arbitrary>], iteration_bounds = array<i64: 1, 1, 2>, scalar_prefetch = 0 : i64, scratch_operands = 1 : i64, tpu.core_type = #tpu.core_type<tc>, window_params = [{transform_indices = @transform_0, window_bounds = array<i64: 8, 512>}, {transform_indices = @transform_1, window_bounds = array<i64: 1, 512>}, {transform_indices = @transform_2, window_bounds = array<i64: 512, 128>}, {transform_indices = @transform_3, window_bounds = array<i64: 1, 128>}, {transform_indices = @transform_4, window_bounds = array<i64: 8, 128>}]} {
    %c0_i32 = arith.constant 0 : i32
    %0 = arith.cmpi eq, %arg2, %c0_i32 : i32
    %1 = arith.extui %0 : i1 to i32
    %c0_i32_0 = arith.constant 0 : i32
    %2 = arith.cmpi ne, %1, %c0_i32_0 : i32
    scf.if %2 {
      %cst_15 = arith.constant 0.000000e+00 : f32
      %24 = vector.broadcast %cst_15 : f32 to vector<8x128xf32>
      %c0_16 = arith.constant 0 : index
      %c0_17 = arith.constant 0 : index
      %25 = vector.load %arg8[%c0_16, %c0_17] : memref<8x128xf32, #tpu.memory_space<vmem>>, vector<8x128xf32>
      tpu.vector_store %arg8[%c0_16, %c0_17], %24 {strides = array<i32>} : memref<8x128xf32, #tpu.memory_space<vmem>>, vector<8x128xf32>,
    } else {
    }
    %c0 = arith.constant 0 : index
    %c0_1 = arith.constant 0 : index
    %3 = vector.load %arg3[%c0, %c0_1] : memref<8x512xf32, #tpu.memory_space<vmem>>, vector<8x512xf32>
    %c0_2 = arith.constant 0 : index
    %c0_3 = arith.constant 0 : index
    %4 = vector.load %arg4[%c0_2, %c0_3] : memref<1x512xf32, #tpu.memory_space<vmem>>, vector<1x512xf32>
    %cst = arith.constant -1.000000e-01 : f32
    %cst_4 = arith.constant 1.000000e-01 : f32
    %5 = vector.broadcast %cst : f32 to vector<1x512xf32>
    %6 = arith.maximumf %5, %4 : vector<1x512xf32>
    %7 = vector.broadcast %cst_4 : f32 to vector<1x512xf32>
    %8 = arith.minimumf %7, %6 : vector<1x512xf32>
    %9 = vector.broadcast %8 : vector<1x512xf32> to vector<8x512xf32>
    %10 = arith.addf %3, %9 : vector<8x512xf32>
    %cst_5 = arith.constant 0.000000e+00 : f32
    %cst_6 = arith.constant 1.000000e+00 : f32
    %11 = vector.broadcast %cst_5 : f32 to vector<8x512xf32>
    %12 = arith.maximumf %11, %10 : vector<8x512xf32>
    %13 = vector.broadcast %cst_6 : f32 to vector<8x512xf32>
    %14 = arith.minimumf %13, %12 : vector<8x512xf32>
    %c0_7 = arith.constant 0 : index
    %c0_8 = arith.constant 0 : index
    %15 = vector.load %arg8[%c0_7, %c0_8] : memref<8x128xf32, #tpu.memory_space<vmem>>, vector<8x128xf32>
    %16 = arith.truncf %14 : vector<8x512xf32> to vector<8x512xbf16>
    %c0_9 = arith.constant 0 : index
    %c0_10 = arith.constant 0 : index
    %17 = vector.load %arg5[%c0_9, %c0_10] : memref<512x128xbf16, #tpu.memory_space<vmem>>, vector<512x128xbf16>
    %cst_11 = arith.constant dense<0.000000e+00> : vector<8x128xf32>
    %18 = tpu.matmul %16, %17, %cst_11 {dimension_numbers = #tpu.dot_dimension_numbers<[1], [0], [0], [1], [0, 0, 1, 1], [], []>} : vector<8x512xbf16>, vector<512x128xbf16>, vector<8x128xf32> -> vector<8x128xf32>
    %19 = arith.addf %15, %18 : vector<8x128xf32>
    %c0_12 = arith.constant 0 : index
    %c0_13 = arith.constant 0 : index
    %20 = vector.load %arg8[%c0_12, %c0_13] : memref<8x128xf32, #tpu.memory_space<vmem>>, vector<8x128xf32>
    tpu.vector_store %arg8[%c0_12, %c0_13], %19 {strides = array<i32>} : memref<8x128xf32, #tpu.memory_space<vmem>>, vector<8x128xf32>,
    %c1_i32 = arith.constant 1 : i32
    %21 = arith.cmpi eq, %arg2, %c1_i32 : i32
    %22 = arith.extui %21 : i1 to i32
    %c0_i32_14 = arith.constant 0 : i32
    %23 = arith.cmpi ne, %22, %c0_i32_14 : i32
    scf.if %23 {
      %c0_15 = arith.constant 0 : index
      %c0_16 = arith.constant 0 : index
      %24 = vector.load %arg8[%c0_15, %c0_16] : memref<8x128xf32, #tpu.memory_space<vmem>>, vector<8x128xf32>
      %c0_17 = arith.constant 0 : index
      %c0_18 = arith.constant 0 : index
      %25 = vector.load %arg6[%c0_17, %c0_18] : memref<1x128xf32, #tpu.memory_space<vmem>>, vector<1x128xf32>
      %26 = vector.broadcast %25 : vector<1x128xf32> to vector<8x128xf32>
      %27 = arith.addf %24, %26 : vector<8x128xf32>
      %c0_19 = arith.constant 0 : index
      %c0_20 = arith.constant 0 : index
      %28 = vector.load %arg7[%c0_19, %c0_20] : memref<8x128xf32, #tpu.memory_space<vmem>>, vector<8x128xf32>
      tpu.vector_store %arg7[%c0_19, %c0_20], %27 {strides = array<i32>} : memref<8x128xf32, #tpu.memory_space<vmem>>, vector<8x128xf32>,
    } else {
    }
    return
  }
  func.func @transform_0(%arg0: i32, %arg1: i32, %arg2: i32) -> (i32, i32) {
    %c0_i32 = arith.constant 0 : i32
    return %arg0, %arg2 : i32, i32
  }
  func.func @transform_1(%arg0: i32, %arg1: i32, %arg2: i32) -> (i32, i32) {
    %c0_i32 = arith.constant 0 : i32
    %c0_i32_0 = arith.constant 0 : i32
    return %c0_i32, %arg2 : i32, i32
  }
  func.func @transform_2(%arg0: i32, %arg1: i32, %arg2: i32) -> (i32, i32) {
    %c0_i32 = arith.constant 0 : i32
    return %arg2, %arg1 : i32, i32
  }
  func.func @transform_3(%arg0: i32, %arg1: i32, %arg2: i32) -> (i32, i32) {
    %c0_i32 = arith.constant 0 : i32
    %c0_i32_0 = arith.constant 0 : i32
    return %c0_i32, %arg1 : i32, i32
  }
  func.func @transform_4(%arg0: i32, %arg1: i32, %arg2: i32) -> (i32, i32) {
    %c0_i32 = arith.constant 0 : i32
    return %arg0, %arg1 : i32, i32
  }
}

</mosaic_0001>

<llo_original>
// kernel: tpu_custom_call.1
$region0: #{tpu_custom_call.1}
  #allocation0 [shape = 'u32[]', space=smem, size = 0x4, offset = 0x4, fixed_abs, tag = 'smem constant byte address 0x4 - core index']
  #allocation1 [shape = 'u32[144,128]{1,0:T(1,128)}', space=vmem, size = 0x12000, scoped, tag = 'internal scratch']
  #allocation2 [shape = 'f32[8,128]{1,0:T(8,128)}', space=vmem, size = 0x1000, scoped, tag = 'scratch operand']
  %s0 = inlined_call_operand.hbm [shape: f32[8,1024], index: 0, kind: input, shape index: {}]
  %s1 = inlined_call_operand.hbm [shape: f32[1,1024], index: 1, kind: input, shape index: {}]
  %s2 = inlined_call_operand.hbm [shape: bf16[1024,128], index: 2, kind: input, shape index: {}]
  %s3 = inlined_call_operand.vmem [shape: f32[1,128], index: 3, kind: input, shape index: {}]
  %s4 = inlined_call_operand.hbm [shape: f32[8,128], index: 4, kind: output, shape index: {}]
  %s5 = sld [smem:[#allocation0]]
  $region69: #{tpu_custom_call.1} parent=0
    _
  %s7 = ssub.s32 1, %s5
  %s8 = scalar_select 0, %s7, %s5
  $region1: #{tpu_custom_call.1} parent=0
    #allocation3 [shape = 'u8[32768]{0}', space=vmem, size = 0x8000, scoped, tag = 'input window, operand 0']
    #allocation4 [shape = 's32[2]{0}', space=sflag, size = 0x8, scoped, tag = 'scoped memory for tpu_custom_call.1']
    #allocation5 [shape = 's32[2]{0}', space=sflag, size = 0x8, scoped, tag = 'scoped memory for tpu_custom_call.1']
    #allocation6 [shape = 'u8[4096]{0}', space=vmem, size = 0x1000, scoped, tag = 'input window, operand 1']
    #allocation7 [shape = 's32[2]{0}', space=sflag, size = 0x8, scoped, tag = 'scoped memory for tpu_custom_call.1']
    #allocation8 [shape = 'u8[262144]{0}', space=vmem, size = 0x40000, scoped, tag = 'input window, operand 2']
    #allocation9 [shape = 'u8[4096]{0}', space=vmem, size = 0x1000, scoped, tag = 'output window, operand 0, single buffered']
    %9 = vsyncpa [#allocation4], 0
    %s10 = scalar_lea.sflag [#allocation4], 1
    %11 = vsyncpa %s10, 0
    %12 = vsyncpa [#allocation7], 0
    %s13 = scalar_lea.sflag [#allocation7], 1
    %14 = vsyncpa %s13, 0
    %15 = vsyncpa [#allocation5], 0
    loop: start=0, step=1, limit=4
    $region2: #{tpu_custom_call.1} parent=1 // loop_pre_header
      _
    $region3: #{tpu_custom_call.1} parent=1 // loop_header
      %s17 = sphi 0, %s21
      %p18 = scmp.ge.s32.totalorder %s17, 4
      %s24 = sphi 0, %s43
      %s25 = sphi 0, %s39
      %s26 = sphi 0, %s35
      %s27 = sphi 0, %s24
      %s28 = sphi 0, %s25
      %s29 = sphi 0, %s26
      %s30 = sphi 0, %s27
      %s31 = sphi 0, %s28
      %s32 = sphi 0, %s29
      %s48 = sphi 0, %s50
      %s51 = sphi 0, %s48
      %s52 = sphi 0, %s51
      %s68 = sphi 0, %s52
      %s74 = sphi 0, %s76
      %s77 = sphi 0, %s74
      %s78 = sphi 0, %s77
      %s94 = sphi 0, %s78
      %s102 = sphi 0, %s104
      %s105 = sphi 0, %s102
      %s106 = sphi 0, %s105
      %s122 = sphi 0, %s106
      %s128 = sphi 0, %s130
      %s131 = sphi 0, %s128
      %s132 = sphi 0, %s131
      %s148 = sphi 0, %s132
      %s156 = sphi 0, %s158
      %s159 = sphi 0, %s156
      %s160 = sphi 0, %s159
      %s176 = sphi 0, %s160
    $region4: #{tpu_custom_call.1} parent=1 // loop_header_branch
      %20 = sbr.rel (%p18) target = $region8
    $region5: #{tpu_custom_call.1} parent=1 // loop_body
      %s22 = ssub.s32 %s17, 1
      %s23 = ssub.s32 %s17, 2
      %s33 = sadd.s32 1, %s26
      %p34 = scmp.ge.s32.totalorder %s33, 2
      %s35 = scalar_select %p34, 0, %s33
      %s36 = sadd.s32 1, %s25
      %s37 = scalar_select %p34, %s36, %s25
      %p38 = scmp.ge.s32.totalorder %s37, 1
      %s39 = scalar_select %p38, 0, %s37
      %s40 = sadd.s32 1, %s24
      %s41 = scalar_select %p38, %s40, %s24
      %p42 = scmp.ge.s32.totalorder %s41, 1
      %s43 = scalar_select %p42, 0, %s41
      %s44 = ssub.s32 %s24, %s43
      %s45 = ssub.s32 %s26, %s35
      %s46 = sor.u32 %s44, %s45
      %p47 = scmp.eq.s32.totalorder %s46, 0
      %s49 = sadd.s32 %s48, 1
      %s50 = scalar_select %p47, %s48, %s49
      %p53 = pneg %p47
      %p54 = scmp.eq.s32.totalorder %s17, 1
      %p55 = por %p53, %p54
      %p56 = scmp.ne.s32.totalorder %s48, %s51
      %p57 = scmp.eq.s32.totalorder %s17, 0
      %p58 = por %p56, %p57
      %p59 = scmp.ne.s32.totalorder %s48, %s51
      %p60 = scmp.eq.s32.totalorder %s22, 1
      %p61 = por %p59, %p60
      %p62 = scmp.ne.s32.totalorder %s51, %s52
      %p63 = scmp.eq.s32.totalorder %s22, 0
      %p64 = por %p62, %p63
      %p65 = scmp.ne.s32.totalorder %s51, %s52
      %p66 = scmp.eq.s32.totalorder %s23, 1
      %p67 = por %p65, %p66
      %p69 = scmp.ne.s32.totalorder %s52, %s68
      %p70 = scmp.eq.s32.totalorder %s23, 0
      %p71 = por %p69, %p70
      %s72 = ssub.s32 %s26, %s35
      %p73 = scmp.eq.s32.totalorder %s72, 0
      %s75 = sadd.s32 %s74, 1
      %s76 = scalar_select %p73, %s74, %s75
      %p79 = pneg %p73
      %p80 = scmp.eq.s32.totalorder %s17, 1
      %p81 = por %p79, %p80
      %p82 = scmp.ne.s32.totalorder %s74, %s77
      %p83 = scmp.eq.s32.totalorder %s17, 0
      %p84 = por %p82, %p83
      %p85 = scmp.ne.s32.totalorder %s74, %s77
      %p86 = scmp.eq.s32.totalorder %s22, 1
      %p87 = por %p85, %p86
      %p88 = scmp.ne.s32.totalorder %s77, %s78
      %p89 = scmp.eq.s32.totalorder %s22, 0
      %p90 = por %p88, %p89
      %p91 = scmp.ne.s32.totalorder %s77, %s78
      %p92 = scmp.eq.s32.totalorder %s23, 1
      %p93 = por %p91, %p92
      %p95 = scmp.ne.s32.totalorder %s78, %s94
      %p96 = scmp.eq.s32.totalorder %s23, 0
      %p97 = por %p95, %p96
      %s98 = ssub.s32 %s26, %s35
      %s99 = ssub.s32 %s25, %s39
      %s100 = sor.u32 %s98, %s99
      %p101 = scmp.eq.s32.totalorder %s100, 0
      %s103 = sadd.s32 %s102, 1
      %s104 = scalar_select %p101, %s102, %s103
      %p107 = pneg %p101
      %p108 = scmp.eq.s32.totalorder %s17, 1
      %p109 = por %p107, %p108
      %p110 = scmp.ne.s32.totalorder %s102, %s105
      %p111 = scmp.eq.s32.totalorder %s17, 0
      %p112 = por %p110, %p111
      %p113 = scmp.ne.s32.totalorder %s102, %s105
      %p114 = scmp.eq.s32.totalorder %s22, 1
      %p115 = por %p113, %p114
      %p116 = scmp.ne.s32.totalorder %s105, %s106
      %p117 = scmp.eq.s32.totalorder %s22, 0
      %p118 = por %p116, %p117
      %p119 = scmp.ne.s32.totalorder %s105, %s106
      %p120 = scmp.eq.s32.totalorder %s23, 1
      %p121 = por %p119, %p120
      %p123 = scmp.ne.s32.totalorder %s106, %s122
      %p124 = scmp.eq.s32.totalorder %s23, 0
      %p125 = por %p123, %p124
      %s126 = ssub.s32 %s25, %s39
      %p127 = scmp.eq.s32.totalorder %s126, 0
      %s129 = sadd.s32 %s128, 1
      %s130 = scalar_select %p127, %s128, %s129
      %p133 = pneg %p127
      %p134 = scmp.eq.s32.totalorder %s17, 1
      %p135 = por %p133, %p134
      %p136 = scmp.ne.s32.totalorder %s128, %s131
      %p137 = scmp.eq.s32.totalorder %s17, 0
      %p138 = por %p136, %p137
      %p139 = scmp.ne.s32.totalorder %s128, %s131
      %p140 = scmp.eq.s32.totalorder %s22, 1
      %p141 = por %p139, %p140
      %p142 = scmp.ne.s32.totalorder %s131, %s132
      %p143 = scmp.eq.s32.totalorder %s22, 0
      %p144 = por %p142, %p143
      %p145 = scmp.ne.s32.totalorder %s131, %s132
      %p146 = scmp.eq.s32.totalorder %s23, 1
      %p147 = por %p145, %p146
      %p149 = scmp.ne.s32.totalorder %s132, %s148
      %p150 = scmp.eq.s32.totalorder %s23, 0
      %p151 = por %p149, %p150
      %s152 = ssub.s32 %s24, %s43
      %s153 = ssub.s32 %s25, %s39
      %s154 = sor.u32 %s152, %s153
      %p155 = scmp.eq.s32.totalorder %s154, 0
      %s157 = sadd.s32 %s156, 1
      %s158 = scalar_select %p155, %s156, %s157
      %p161 = pneg %p155
      %p162 = scmp.eq.s32.totalorder %s17, 1
      %p163 = por %p161, %p162
      %p164 = scmp.ne.s32.totalorder %s156, %s159
      %p165 = scmp.eq.s32.totalorder %s17, 0
      %p166 = por %p164, %p165
      %p167 = scmp.ne.s32.totalorder %s156, %s159
      %p168 = scmp.eq.s32.totalorder %s22, 1
      %p169 = por %p167, %p168
      %p170 = scmp.ne.s32.totalorder %s159, %s160
      %p171 = scmp.eq.s32.totalorder %s22, 0
      %p172 = por %p170, %p171
      %p173 = scmp.ne.s32.totalorder %s159, %s160
      %p174 = scmp.eq.s32.totalorder %s23, 1
      %p175 = por %p173, %p174
      %p177 = scmp.ne.s32.totalorder %s160, %s176
      %p178 = scmp.eq.s32.totalorder %s23, 0
      %p179 = por %p177, %p178
      %p180 = scmp.le.s32.totalorder 1, %s17
      %p181 = scmp.lt.s32.totalorder %s17, 3
      %p182 = pnand %p180, %p181
      %p183 = pneg %p182
      // Predicated region
      $region9: #{tpu_custom_call.1} parent=5 // pred_check
        _
      $region10: #{tpu_custom_call.1} parent=5 // pred_check_branch
        %185 = sbr.rel (%p182) target = $region12
      $region11: #{tpu_custom_call.1} parent=5 // pred_region
        %s186 = ssub.s32 %s17, 1
        // Predicated region
        $region13: #{tpu_custom_call.1} parent=11 // pred_check
          %p187 = pneg %p144
        $region14: #{tpu_custom_call.1} parent=11 // pred_check_branch
          %189 = sbr.rel (%p187) target = $region16
        $region15: #{tpu_custom_call.1} parent=11 // pred_region
          %p190 = scmp.lt.s32.totalorder %s28, 0
          %s191 = scalar_select %p190, %s28, 0
          %s192 = scalar_lea.vmem %s3, %s191
        $region16: #{tpu_custom_call.1} parent=11 // pred_fallthru
          _
      $region12: #{tpu_custom_call.1} parent=5 // pred_fallthru
        _
      %p193 = scmp.lt.s32.totalorder %s17, 2
      // Predicated region
      $region17: #{tpu_custom_call.1} parent=5 // pred_check
        %p194 = pneg %p193
      $region18: #{tpu_custom_call.1} parent=5 // pred_check_branch
        %196 = sbr.rel (%p194) target = $region20
      $region19: #{tpu_custom_call.1} parent=5 // pred_region
        // Predicated region
        $region21: #{tpu_custom_call.1} parent=19 // pred_check
          %p197 = pneg %p58
        $region22: #{tpu_custom_call.1} parent=19 // pred_check_branch
          %199 = sbr.rel (%p197) target = $region24
        $region23: #{tpu_custom_call.1} parent=19 // pred_region
          %s200 = sand.u32 %s48, 1
          %s201 = scalar_lea.sflag [#allocation4], %s200
          %s202 = sand.u32 %s48, 1
          %s203 = smul.addr %s202, 32
          %s204 = scalar_lea.vmem [#allocation3], %s203
          %s205 = smul.u32 4, %s26
          %s207 = ssub.s32 512, 512
          %208 = vsyncadd %s201, %s207
          %s209 = smul.addr %s24, 8
          %s210 = sadd.s32 %s205, %s209
          %s211 = smul.addr %s210, 128
          %s212 = scalar_lea.hbm %s0, %s211
          %s214 = sshll.u32 %s204, 4
          %s215 = int_to_ptr.vmem [resolvable:$true] %s214
          %217 = dma.hbm_to_vmem [thread:$0]  %s212, 512, %s215, %s201
        $region24: #{tpu_custom_call.1} parent=19 // pred_fallthru
          _
        // Predicated region
        $region25: #{tpu_custom_call.1} parent=19 // pred_check
          %p218 = pneg %p84
        $region26: #{tpu_custom_call.1} parent=19 // pred_check_branch
          %220 = sbr.rel (%p218) target = $region28
        $region27: #{tpu_custom_call.1} parent=19 // pred_region
          %s221 = sand.u32 %s17, 1
          %s222 = scalar_lea.sflag [#allocation7], %s221
          %s223 = sand.u32 %s74, 1
          %s224 = smul.addr %s223, 4
          %s225 = scalar_lea.vmem [#allocation6], %s224
          %s226 = smul.u32 4, %s26
          %s228 = ssub.s32 64, 64
          %229 = vsyncadd %s222, %s228
          %s230 = smul.addr %s226, 16
          %s231 = scalar_lea.hbm %s1, %s230
          %s233 = sshll.u32 %s225, 4
          %s234 = int_to_ptr.vmem [resolvable:$true] %s233
          %236 = dma.hbm_to_vmem [thread:$0]  %s231, 64, %s234, %s222
        $region28: #{tpu_custom_call.1} parent=19 // pred_fallthru
          _
        // Predicated region
        $region29: #{tpu_custom_call.1} parent=19 // pred_check
          %p237 = pneg %p112
        $region30: #{tpu_custom_call.1} parent=19 // pred_check_branch
          %239 = sbr.rel (%p237) target = $region32
        $region31: #{tpu_custom_call.1} parent=19 // pred_region
          %s240 = sand.u32 %s17, 1
          %s241 = scalar_lea.sflag [#allocation7], %s240
          %s242 = sand.u32 %s102, 1
          %s243 = smul.addr %s242, 256
          %s244 = scalar_lea.vmem [#allocation8], %s243
          %s245 = smul.u32 64, %s26
          %s247 = ssub.s32 4096, 4096
          %248 = vsyncadd %s241, %s247
          %s249 = sadd.s32 %s25, %s245
          %s250 = smul.addr %s249, 64
          %s251 = scalar_lea.hbm %s2, %s250
          %s252 = sshll.u32 %s244, 4
          %s253 = int_to_ptr.vmem [resolvable:$true] %s252
          %258 = dma.hbm_to_vmem [thread:$0]  %s251, 4096, %s253, %s241, 64, 64, 4
        $region32: #{tpu_custom_call.1} parent=19 // pred_fallthru
          _
      $region20: #{tpu_custom_call.1} parent=5 // pred_fallthru
        _
      %p259 = scmp.le.s32.totalorder 1, %s17
      %p260 = scmp.lt.s32.totalorder %s17, 3
      %p261 = pnand %p259, %p260
      %p262 = pneg %p261
      // Predicated region
      $region33: #{tpu_custom_call.1} parent=5 // pred_check
        _
      $region34: #{tpu_custom_call.1} parent=5 // pred_check_branch
        %264 = sbr.rel (%p261) target = $region36
      $region35: #{tpu_custom_call.1} parent=5 // pred_region
        %s265 = ssub.s32 %s17, 1
        %s266 = sand.u32 %s51, 1
        %s267 = scalar_lea.sflag [#allocation4], %s266
        %s268 = sand.u32 %s51, 1
        %s269 = smul.addr %s268, 32
        %s270 = scalar_lea.vmem [#allocation3], %s269
        // Predicated region
        $region37: #{tpu_custom_call.1} parent=35 // pred_check
          %p271 = pneg %p64
        $region38: #{tpu_custom_call.1} parent=35 // pred_check_branch
          %273 = sbr.rel (%p271) target = $region40
        $region39: #{tpu_custom_call.1} parent=35 // pred_region
          %274 = dma.done %s267, 512
        $region40: #{tpu_custom_call.1} parent=35 // pred_fallthru
          _
        %s275 = sand.u32 %s22, 1
        %s276 = scalar_lea.sflag [#allocation7], %s275
        %s277 = sand.u32 %s77, 1
        %s278 = smul.addr %s277, 4
        %s279 = scalar_lea.vmem [#allocation6], %s278
        // Predicated region
        $region41: #{tpu_custom_call.1} parent=35 // pred_check
          %p280 = pneg %p90
        $region42: #{tpu_custom_call.1} parent=35 // pred_check_branch
          %282 = sbr.rel (%p280) target = $region44
        $region43: #{tpu_custom_call.1} parent=35 // pred_region
          %283 = dma.done %s276, 64
        $region44: #{tpu_custom_call.1} parent=35 // pred_fallthru
          _
        %s284 = sand.u32 %s22, 1
        %s285 = scalar_lea.sflag [#allocation7], %s284
        %s286 = sand.u32 %s105, 1
        %s287 = smul.addr %s286, 256
        %s288 = scalar_lea.vmem [#allocation8], %s287
        // Predicated region
        $region45: #{tpu_custom_call.1} parent=35 // pred_check
          %p289 = pneg %p118
        $region46: #{tpu_custom_call.1} parent=35 // pred_check_branch
          %291 = sbr.rel (%p289) target = $region48
        $region47: #{tpu_custom_call.1} parent=35 // pred_region
          %292 = dma.done %s285, 4096
        $region48: #{tpu_custom_call.1} parent=35 // pred_fallthru
          _
        %s293 = sand.u32 %s51, 1
        %s294 = scalar_lea.sflag [#allocation4], %s293
        %s295 = sand.u32 %s51, 1
        %s296 = smul.addr %s295, 32
        %s297 = scalar_lea.vmem [#allocation3], %s296
        %p298 = pneg %p64
        %p299 = pneg %p61
        %s300 = sand.u32 %s22, 1
        %s301 = scalar_lea.sflag [#allocation7], %s300
        %s302 = sand.u32 %s77, 1
        %s303 = smul.addr %s302, 4
        %s304 = scalar_lea.vmem [#allocation6], %s303
        %p305 = pneg %p90
        %p306 = pneg %p87
        %s307 = sand.u32 %s22, 1
        %s308 = scalar_lea.sflag [#allocation7], %s307
        %s309 = sand.u32 %s105, 1
        %s310 = smul.addr %s309, 256
        %s311 = scalar_lea.vmem [#allocation8], %s310
        %p312 = pneg %p118
        %p313 = pneg %p115
        %p314 = scmp.lt.s32.totalorder %s28, 0
        %s315 = scalar_select %p314, %s28, 0
        %s316 = scalar_lea.vmem %s3, %s315
        %p317 = pneg %p144
        %p318 = pneg %p141
        %p319 = pneg %p172
        %p320 = pneg %p169
        %s321 = smul.u32 4, %s29
        %s322 = smul.u32 4, %s29
        %s323 = smul.u32 64, %s29
        %p324 = scmp.lt.s32.totalorder %s28, 0
        %s325 = scalar_select %p324, %s28, 0
        %s326 = scalar_lea.vmem %s3, %s325
        %p328 = scmp.eq.s32.totalorder %s29, 0
        // Predicated region
        $region49: #{tpu_custom_call.1} parent=35 // pred_check
          %p329 = pneg %p328
        $region50: #{tpu_custom_call.1} parent=35 // pred_check_branch
          %331 = sbr.rel (%p329) target = $region52
        $region51: #{tpu_custom_call.1} parent=35 // pred_region
          %332 = vst [vmem:[#allocation2] sm:$0xff] 0.0
        $region52: #{tpu_custom_call.1} parent=35 // pred_fallthru
          _
        %v333 = vld [vmem:[%s270] sm:$0xff]
        %v334 = vld [vmem:[%s270 + $0x8] sm:$0xff]
        %v335 = vld [vmem:[%s270 + $0x10] sm:$0xff]
        %v336 = vld [vmem:[%s270 + $0x18] sm:$0xff]
        %v337 = vld [vmem:[%s279] sm:$0xf]
        %v338 = vmax.f32 %v337, -0.1
        %v339 = vmin.f32 %v338, 0.1
        %v341 = vlaneseq
        %v342 = vshrl.u32 %v341, 7
        %v343 = vsub.s32 0, %v342
        %v344 = vrot.slane %v339, %v343
        %v345 = vlaneseq
        %v346 = vshrl.u32 %v345, 7
        %v347 = vsub.s32 1, %v346
        %v348 = vrot.slane %v339, %v347
        %v349 = vlaneseq
        %v350 = vshrl.u32 %v349, 7
        %v351 = vsub.s32 2, %v350
        %v352 = vrot.slane %v339, %v351
        %v353 = vlaneseq
        %v354 = vshrl.u32 %v353, 7
        %v355 = vsub.s32 3, %v354
        %v356 = vrot.slane %v339, %v355
        %v361 = vadd.f32 %v333, %v344
        %v362 = vadd.f32 %v334, %v348
        %v363 = vadd.f32 %v335, %v352
        %v364 = vadd.f32 %v336, %v356
        %v365 = vmax.f32 %v361, 0.0
        %v366 = vmax.f32 %v362, 0.0
        %v367 = vmax.f32 %v363, 0.0
        %v368 = vmax.f32 %v364, 0.0
        %v369 = vmin.f32 %v365, 1.0
        %v370 = vmin.f32 %v366, 1.0
        %v371 = vmin.f32 %v367, 1.0
        %v372 = vmin.f32 %v368, 1.0
        %v373 = vld [vmem:[#allocation2] sm:$0xff]
        %v374 = vpack.c.bf16 %v369, %v369
        %v375 = vpack.c.bf16 %v370, %v370
        %v376 = vpack.c.bf16 %v371, %v371
        %v377 = vpack.c.bf16 %v372, %v372
        %v378 = vld [vmem:[%s288] sm:$0xf]
        %v379 = vld [vmem:[%s288 + $0x4] sm:$0xf]
        %v380 = vld [vmem:[%s288 + $0x8] sm:$0xf]
        %v381 = vld [vmem:[%s288 + $0xc] sm:$0xf]
        %v382 = vld [vmem:[%s288 + $0x10] sm:$0xf]
        %v383 = vld [vmem:[%s288 + $0x14] sm:$0xf]
        %v384 = vld [vmem:[%s288 + $0x18] sm:$0xf]
        %v385 = vld [vmem:[%s288 + $0x1c] sm:$0xf]
        %v386 = vld [vmem:[%s288 + $0x20] sm:$0xf]
        %v387 = vld [vmem:[%s288 + $0x24] sm:$0xf]
        %v388 = vld [vmem:[%s288 + $0x28] sm:$0xf]
        %v389 = vld [vmem:[%s288 + $0x2c] sm:$0xf]
        %v390 = vld [vmem:[%s288 + $0x30] sm:$0xf]
        %v391 = vld [vmem:[%s288 + $0x34] sm:$0xf]
        %v392 = vld [vmem:[%s288 + $0x38] sm:$0xf]
        %v393 = vld [vmem:[%s288 + $0x3c] sm:$0xf]
        %v394 = vld [vmem:[%s288 + $0x40] sm:$0xf]
        %v395 = vld [vmem:[%s288 + $0x44] sm:$0xf]
        %v396 = vld [vmem:[%s288 + $0x48] sm:$0xf]
        %v397 = vld [vmem:[%s288 + $0x4c] sm:$0xf]
        %v398 = vld [vmem:[%s288 + $0x50] sm:$0xf]
        %v399 = vld [vmem:[%s288 + $0x54] sm:$0xf]
        %v400 = vld [vmem:[%s288 + $0x58] sm:$0xf]
        %v401 = vld [vmem:[%s288 + $0x5c] sm:$0xf]
        %v402 = vld [vmem:[%s288 + $0x60] sm:$0xf]
        %v403 = vld [vmem:[%s288 + $0x64] sm:$0xf]
        %v404 = vld [vmem:[%s288 + $0x68] sm:$0xf]
        %v405 = vld [vmem:[%s288 + $0x6c] sm:$0xf]
        %v406 = vld [vmem:[%s288 + $0x70] sm:$0xf]
        %v407 = vld [vmem:[%s288 + $0x74] sm:$0xf]
        %v408 = vld [vmem:[%s288 + $0x78] sm:$0xf]
        %v409 = vld [vmem:[%s288 + $0x7c] sm:$0xf]
        %v410 = vld [vmem:[%s288 + $0x80] sm:$0xf]
        %v411 = vld [vmem:[%s288 + $0x84] sm:$0xf]
        %v412 = vld [vmem:[%s288 + $0x88] sm:$0xf]
        %v413 = vld [vmem:[%s288 + $0x8c] sm:$0xf]
        %v414 = vld [vmem:[%s288 + $0x90] sm:$0xf]
        %v415 = vld [vmem:[%s288 + $0x94] sm:$0xf]
        %v416 = vld [vmem:[%s288 + $0x98] sm:$0xf]
        %v417 = vld [vmem:[%s288 + $0x9c] sm:$0xf]
        %v418 = vld [vmem:[%s288 + $0xa0] sm:$0xf]
        %v419 = vld [vmem:[%s288 + $0xa4] sm:$0xf]
        %v420 = vld [vmem:[%s288 + $0xa8] sm:$0xf]
        %v421 = vld [vmem:[%s288 + $0xac] sm:$0xf]
        %v422 = vld [vmem:[%s288 + $0xb0] sm:$0xf]
        %v423 = vld [vmem:[%s288 + $0xb4] sm:$0xf]
        %v424 = vld [vmem:[%s288 + $0xb8] sm:$0xf]
        %v425 = vld [vmem:[%s288 + $0xbc] sm:$0xf]
        %v426 = vld [vmem:[%s288 + $0xc0] sm:$0xf]
        %v427 = vld [vmem:[%s288 + $0xc4] sm:$0xf]
        %v428 = vld [vmem:[%s288 + $0xc8] sm:$0xf]
        %v429 = vld [vmem:[%s288 + $0xcc] sm:$0xf]
        %v430 = vld [vmem:[%s288 + $0xd0] sm:$0xf]
        %v431 = vld [vmem:[%s288 + $0xd4] sm:$0xf]
        %v432 = vld [vmem:[%s288 + $0xd8] sm:$0xf]
        %v433 = vld [vmem:[%s288 + $0xdc] sm:$0xf]
        %v434 = vld [vmem:[%s288 + $0xe0] sm:$0xf]
        %v435 = vld [vmem:[%s288 + $0xe4] sm:$0xf]
        %v436 = vld [vmem:[%s288 + $0xe8] sm:$0xf]
        %v437 = vld [vmem:[%s288 + $0xec] sm:$0xf]
        %v438 = vld [vmem:[%s288 + $0xf0] sm:$0xf]
        %v439 = vld [vmem:[%s288 + $0xf4] sm:$0xf]
        %v440 = vld [vmem:[%s288 + $0xf8] sm:$0xf]
        %v441 = vld [vmem:[%s288 + $0xfc] sm:$0xf]
        %v506 = vunpack.c.l.b16 %v378
        %v507 = vunpack.c.l.b16 %v379
        %v508 = vunpack.c.l.b16 %v380
        %v509 = vunpack.c.l.b16 %v381
        %v510 = vunpack.c.l.b16 %v382
        %v511 = vunpack.c.l.b16 %v383
        %v512 = vunpack.c.l.b16 %v384
        %v513 = vunpack.c.l.b16 %v385
        %v514 = vunpack.c.l.b16 %v386
        %v515 = vunpack.c.l.b16 %v387
        %v516 = vunpack.c.l.b16 %v388
        %v517 = vunpack.c.l.b16 %v389
        %v518 = vunpack.c.l.b16 %v390
        %v519 = vunpack.c.l.b16 %v391
        %v520 = vunpack.c.l.b16 %v392
        %v521 = vunpack.c.l.b16 %v393
        %v522 = vunpack.c.l.b16 %v394
        %v523 = vunpack.c.l.b16 %v395
        %v524 = vunpack.c.l.b16 %v396
        %v525 = vunpack.c.l.b16 %v397
        %v526 = vunpack.c.l.b16 %v398
        %v527 = vunpack.c.l.b16 %v399
        %v528 = vunpack.c.l.b16 %v400
        %v529 = vunpack.c.l.b16 %v401
        %v530 = vunpack.c.l.b16 %v402
        %v531 = vunpack.c.l.b16 %v403
        %v532 = vunpack.c.l.b16 %v404
        %v533 = vunpack.c.l.b16 %v405
        %v534 = vunpack.c.l.b16 %v406
        %v535 = vunpack.c.l.b16 %v407
        %v536 = vunpack.c.l.b16 %v408
        %v537 = vunpack.c.l.b16 %v409
        %v538 = vunpack.c.l.b16 %v410
        %v539 = vunpack.c.l.b16 %v411
        %v540 = vunpack.c.l.b16 %v412
        %v541 = vunpack.c.l.b16 %v413
        %v542 = vunpack.c.l.b16 %v414
        %v543 = vunpack.c.l.b16 %v415
        %v544 = vunpack.c.l.b16 %v416
        %v545 = vunpack.c.l.b16 %v417
        %v546 = vunpack.c.l.b16 %v418
        %v547 = vunpack.c.l.b16 %v419
        %v548 = vunpack.c.l.b16 %v420
        %v549 = vunpack.c.l.b16 %v421
        %v550 = vunpack.c.l.b16 %v422
        %v551 = vunpack.c.l.b16 %v423
        %v552 = vunpack.c.l.b16 %v424
        %v553 = vunpack.c.l.b16 %v425
        %v554 = vunpack.c.l.b16 %v426
        %v555 = vunpack.c.l.b16 %v427
        %v556 = vunpack.c.l.b16 %v428
        %v557 = vunpack.c.l.b16 %v429
        %v558 = vunpack.c.l.b16 %v430
        %v559 = vunpack.c.l.b16 %v431
        %v560 = vunpack.c.l.b16 %v432
        %v561 = vunpack.c.l.b16 %v433
        %v562 = vunpack.c.l.b16 %v434
        %v563 = vunpack.c.l.b16 %v435
        %v564 = vunpack.c.l.b16 %v436
        %v565 = vunpack.c.l.b16 %v437
        %v566 = vunpack.c.l.b16 %v438
        %v567 = vunpack.c.l.b16 %v439
        %v568 = vunpack.c.l.b16 %v440
        %v569 = vunpack.c.l.b16 %v441
        %v570 = vpack.c.b16 %v507, %v506
        %v571 = vpack.c.b16 %v509, %v508
        %v572 = vpack.c.b16 %v511, %v510
        %v573 = vpack.c.b16 %v513, %v512
        %v574 = vpack.c.b16 %v515, %v514
        %v575 = vpack.c.b16 %v517, %v516
        %v576 = vpack.c.b16 %v519, %v518
        %v577 = vpack.c.b16 %v521, %v520
        %v578 = vpack.c.b16 %v523, %v522
        %v579 = vpack.c.b16 %v525, %v524
        %v580 = vpack.c.b16 %v527, %v526
        %v581 = vpack.c.b16 %v529, %v528
        %v582 = vpack.c.b16 %v531, %v530
        %v583 = vpack.c.b16 %v533, %v532
        %v584 = vpack.c.b16 %v535, %v534
        %v585 = vpack.c.b16 %v537, %v536
        %v586 = vpack.c.b16 %v539, %v538
        %v587 = vpack.c.b16 %v541, %v540
        %v588 = vpack.c.b16 %v543, %v542
        %v589 = vpack.c.b16 %v545, %v544
        %v590 = vpack.c.b16 %v547, %v546
        %v591 = vpack.c.b16 %v549, %v548
        %v592 = vpack.c.b16 %v551, %v550
        %v593 = vpack.c.b16 %v553, %v552
        %v594 = vpack.c.b16 %v555, %v554
        %v595 = vpack.c.b16 %v557, %v556
        %v596 = vpack.c.b16 %v559, %v558
        %v597 = vpack.c.b16 %v561, %v560
        %v598 = vpack.c.b16 %v563, %v562
        %v599 = vpack.c.b16 %v565, %v564
        %v600 = vpack.c.b16 %v567, %v566
        %v601 = vpack.c.b16 %v569, %v568
        %634 = vmatprep.subr.bf16.mxu0 0
        %635 = vmatpush1.bf16.msra.mxu0 %v577
        %636 = vmatprep.subr.bf16.mxu0 0
        %637 = vmatpush1.bf16.msra.mxu0 %v576
        %638 = vmatprep.subr.bf16.mxu0 0
        %639 = vmatpush1.bf16.msra.mxu0 %v575
        %640 = vmatprep.subr.bf16.mxu0 0
        %641 = vmatpush1.bf16.msra.mxu0 %v574
        %642 = vmatprep.subr.bf16.mxu0 0
        %643 = vmatpush1.bf16.msra.mxu0 %v573
        %644 = vmatprep.subr.bf16.mxu0 0
        %645 = vmatpush1.bf16.msra.mxu0 %v572
        %646 = vmatprep.subr.bf16.mxu0 0
        %647 = vmatpush1.bf16.msra.mxu0 %v571
        %648 = vmatprep.subr.bf16.mxu0 0
        %649 = vmatpush1.bf16.msra.mxu0 %v570
        %650 = vmatprep.subr.bf16.mxu0 0
        %651 = vmatpush2.bf16.msra.mxu0 %v585
        %652 = vmatprep.subr.bf16.mxu0 0
        %653 = vmatpush2.bf16.msra.mxu0 %v584
        %654 = vmatprep.subr.bf16.mxu0 0
        %655 = vmatpush2.bf16.msra.mxu0 %v583
        %656 = vmatprep.subr.bf16.mxu0 0
        %657 = vmatpush2.bf16.msra.mxu0 %v582
        %658 = vmatprep.subr.bf16.mxu0 0
        %659 = vmatpush2.bf16.msra.mxu0 %v581
        %660 = vmatprep.subr.bf16.mxu0 0
        %661 = vmatpush2.bf16.msra.mxu0 %v580
        %662 = vmatprep.subr.bf16.mxu0 0
        %663 = vmatpush2.bf16.msra.mxu0 %v579
        %664 = vmatprep.subr.bf16.mxu0 0
        %665 = vmatpush2.bf16.msra.mxu0 %v578
        %666 = vmatprep.mubr.bf16.mxu0 %v375
        %667 = vmatmul.mubr.bf16.gmra.mxu0 %v374
        %v668 = vpop.f32.mrf.mxu0
        %v669 = vadd.f32 0.0, %v668
        %v670 = vpop.f32.mrf.mxu0
        %v671 = vpop.f32.mrf.mxu0
        %v672 = vpop.f32.mrf.mxu0
        %673 = vdwg.mxu0
        %674 = vmatprep.subr.bf16.mxu0 0
        %675 = vmatpush1.bf16.msra.mxu0 %v593
        %676 = vmatprep.subr.bf16.mxu0 0
        %677 = vmatpush1.bf16.msra.mxu0 %v592
        %678 = vmatprep.subr.bf16.mxu0 0
        %679 = vmatpush1.bf16.msra.mxu0 %v591
        %680 = vmatprep.subr.bf16.mxu0 0
        %681 = vmatpush1.bf16.msra.mxu0 %v590
        %682 = vmatprep.subr.bf16.mxu0 0
        %683 = vmatpush1.bf16.msra.mxu0 %v589
        %684 = vmatprep.subr.bf16.mxu0 0
        %685 = vmatpush1.bf16.msra.mxu0 %v588
        %686 = vmatprep.subr.bf16.mxu0 0
        %687 = vmatpush1.bf16.msra.mxu0 %v587
        %688 = vmatprep.subr.bf16.mxu0 0
        %689 = vmatpush1.bf16.msra.mxu0 %v586
        %690 = vmatprep.subr.bf16.mxu0 0
        %691 = vmatpush2.bf16.msra.mxu0 %v601
        %692 = vmatprep.subr.bf16.mxu0 0
        %693 = vmatpush2.bf16.msra.mxu0 %v600
        %694 = vmatprep.subr.bf16.mxu0 0
        %695 = vmatpush2.bf16.msra.mxu0 %v599
        %696 = vmatprep.subr.bf16.mxu0 0
        %697 = vmatpush2.bf16.msra.mxu0 %v598
        %698 = vmatprep.subr.bf16.mxu0 0
        %699 = vmatpush2.bf16.msra.mxu0 %v597
        %700 = vmatprep.subr.bf16.mxu0 0
        %701 = vmatpush2.bf16.msra.mxu0 %v596
        %702 = vmatprep.subr.bf16.mxu0 0
        %703 = vmatpush2.bf16.msra.mxu0 %v595
        %704 = vmatprep.subr.bf16.mxu0 0
        %705 = vmatpush2.bf16.msra.mxu0 %v594
        %706 = vmatprep.mubr.bf16.mxu0 %v377
        %707 = vmatmul.mubr.bf16.gmra.mxu0 %v376
        %v708 = vpop.f32.mrf.mxu0
        %v709 = vadd.f32 %v669, %v708
        %v710 = vpop.f32.mrf.mxu0
        %v711 = vpop.f32.mrf.mxu0
        %v712 = vpop.f32.mrf.mxu0
        %713 = vdwg.mxu0
        %v714 = vadd.f32 %v373, %v709
        %715 = vst [vmem:[#allocation2] sm:$0xff] %v714
        %p716 = scmp.eq.s32.totalorder %s29, 1
        // Predicated region
        $region53: #{tpu_custom_call.1} parent=35 // pred_check
          %p717 = pneg %p716
        $region54: #{tpu_custom_call.1} parent=35 // pred_check_branch
          %719 = sbr.rel (%p717) target = $region56
        $region55: #{tpu_custom_call.1} parent=35 // pred_region
          %v720 = vld [vmem:[#allocation2] sm:$0xff]
          %v721 = vld [vmem:[%s326] sm:$0x1]
          %v723 = vlaneseq
          %v724 = vshrl.u32 %v723, 7
          %v725 = vsub.s32 0, %v724
          %v726 = vrot.slane %v721, %v725
          %v728 = vadd.f32 %v720, %v726
          %729 = vst [vmem:[#allocation9] sm:$0xff] %v728
        $region56: #{tpu_custom_call.1} parent=35 // pred_fallthru
          _
        // Predicated region
        $region57: #{tpu_custom_call.1} parent=35 // pred_check
          %p730 = pneg %p169
        $region58: #{tpu_custom_call.1} parent=35 // pred_check_branch
          %732 = sbr.rel (%p730) target = $region60
        $region59: #{tpu_custom_call.1} parent=35 // pred_region
          %s734 = ssub.s32 128, 128
          %735 = vsyncadd [#allocation5], %s734
          %s736 = sadd.s32 %s28, %s27
          %s737 = smul.addr %s736, 128
          %s738 = scalar_lea.hbm %s4, %s737
          %s740 = sshll.u32 [#allocation9], 4
          %s741 = int_to_ptr.vmem [resolvable:$true] %s740
          %743 = dma.vmem_to_hbm [thread:$0]  %s741, 128, %s738, [#allocation5]
        $region60: #{tpu_custom_call.1} parent=35 // pred_fallthru
          _
        // Predicated region
        $region61: #{tpu_custom_call.1} parent=35 // pred_check
          %p744 = pneg %p169
        $region62: #{tpu_custom_call.1} parent=35 // pred_check_branch
          %746 = sbr.rel (%p744) target = $region64
        $region63: #{tpu_custom_call.1} parent=35 // pred_region
          %747 = dma.done [#allocation5], 128
        $region64: #{tpu_custom_call.1} parent=35 // pred_fallthru
          _
      $region36: #{tpu_custom_call.1} parent=5 // pred_fallthru
        _
      %p748 = scmp.le.s32.totalorder 2, %s17
      // Predicated region
      $region65: #{tpu_custom_call.1} parent=5 // pred_check
        %p749 = pneg %p748
      $region66: #{tpu_custom_call.1} parent=5 // pred_check_branch
        %751 = sbr.rel (%p749) target = $region68
      $region67: #{tpu_custom_call.1} parent=5 // pred_region
        %s752 = ssub.s32 %s17, 2
      $region68: #{tpu_custom_call.1} parent=5 // pred_fallthru
        _
    $region6: #{tpu_custom_call.1} parent=1 // loop_footer
      %s21 = sadd.s32 1, %s17
    $region7: #{tpu_custom_call.1} parent=1 // loop_footer_branch
      %16 = sbr.rel target = $region3
    $region8: #{tpu_custom_call.1} parent=1 // loop_exit
      _
    %753 = vsyncpa [#allocation4], 1
    %s754 = scalar_lea.sflag [#allocation4], 1
    %755 = vsyncpa %s754, 1
    %756 = vsyncpa [#allocation7], 1
    %s757 = scalar_lea.sflag [#allocation7], 1
    %758 = vsyncpa %s757, 1
    %759 = vsyncpa [#allocation5], 1
    %s760 = scalar_lea.sflag [#allocation5], 1
    %761 = vsyncpa %s760, 1

</llo_original>
